<compile_context>
chip_gen: v7x
topology: tpu7x:2x2x1
jax: 0.10.0
libtpu: 0.0.40
codegen_flags: <defaults>
</compile_context>

<pallas_src>
import jax
import jax.numpy as jnp
import numpy as np
from jax.experimental import pallas as pl
from jax.experimental.pallas import tpu as pltpu

_LANES = 128

# SMPLifyAnglePrior constants (indices into full_pose[:, 3:66]):
_ANGLE_IDXS = np.array([55, 58, 12, 15], dtype=np.int64) - 3     # [52, 55, 9, 12]
_ANGLE_SIGNS = np.array([1.0, -1.0, -1.0, -1.0], dtype=np.float32)


# ----------------------------------------------------------------------------
# Pallas kernel: one packed slab in, one fused reduction, scalar out.
# ----------------------------------------------------------------------------
def _smplify_loss_kernel(sc_ref,       # SMEM (2,)          [data_weight^2, rho^2]
                         slab_ref,     # VMEM (11, B, 128)  packed inputs (see rows below)
                         out_ref):     # SMEM (1, 1)        total loss
    data_w2 = sc_ref[0]
    rho2 = sc_ref[1]

    # rows 0..5: gt_x, gt_y, proj_x, proj_y, conf, joint_w  (J padded to 128)
    dx = slab_ref[0] - slab_ref[2]
    dy = slab_ref[1] - slab_ref[3]
    dx2 = dx * dx
    dy2 = dy * dy
    gmof = rho2 * (dx2 / (dx2 + rho2)) + rho2 * (dy2 / (dy2 + rho2))
    w = slab_ref[4] * slab_ref[5]
    data_term = (w * w) * gmof * data_w2                      # (B, 128)

    # row 6: [body_pose | betas | lhand | rhand | expr | jaw] padded to 128
    # row 8: per-column squared prior weights (zero on padding)
    pv = slab_ref[6]
    l2_term = pv * pv * slab_ref[8]                           # (B, 128)

    # row 7: full_pose[:, 3:66] padded;  row 9: 2*sign at angle idxs (0 else)
    # row 10: bending_prior_weight at angle idxs (0 else)
    angle_term = jnp.exp(slab_ref[7] * slab_ref[9]) * slab_ref[10]

    out_ref[0, 0] = jnp.sum(data_term + l2_term + angle_term)


# ----------------------------------------------------------------------------
# Wrapper: pack everything into one lane-dense slab + 2 SMEM scalars.
# ----------------------------------------------------------------------------
def _pad_lanes(x, width=_LANES):
    x = jnp.asarray(x, jnp.float32)
    pad = width - x.shape[-1]
    assert pad >= 0, f"lane dim {x.shape[-1]} > {width}"
    return jnp.pad(x, ((0, 0), (0, pad)))


def smplify_loss(gt_joints, projected_joints, joints_conf, joint_weights,
                 body_pose, betas, full_pose,
                 left_hand_pose, right_hand_pose, expression, jaw_pose,
                 *, rho=100.0, data_weight=1.0, body_pose_weight=0.0,
                 shape_weight=0.0, bending_prior_weight=0.0,
                 hand_prior_weight=0.0, expr_prior_weight=0.0,
                 jaw_prior_weight=0.0):
    B, J, C = gt_joints.shape
    assert C == 2 and projected_joints.shape == (B, J, C)
    assert J <= _LANES

    f32 = jnp.float32
    gt = gt_joints.astype(f32)
    pj = projected_joints.astype(f32)

    # --- joint data term rows (J padded to 128; padded conf/jw are zero) ------
    gt_x = _pad_lanes(gt[:, :, 0])
    gt_y = _pad_lanes(gt[:, :, 1])
    pj_x = _pad_lanes(pj[:, :, 0])
    pj_y = _pad_lanes(pj[:, :, 1])
    conf = _pad_lanes(joints_conf)
    jw = _pad_lanes(joint_weights)

    # --- all L2-prior parameters concatenated along the lane axis -------------
    parts = [body_pose.astype(f32), betas.astype(f32),
             left_hand_pose.astype(f32), right_hand_pose.astype(f32),
             expression.astype(f32), jaw_pose.astype(f32)]
    dims = [p.shape[-1] for p in parts]
    assert sum(dims) <= _LANES
    prior_row = _pad_lanes(jnp.concatenate(parts, axis=-1))   # (B, 128)

    # per-column squared weights for every L2 segment (zeros on padding)
    w2s = [body_pose_weight ** 2, shape_weight ** 2, hand_prior_weight ** 2,
           hand_prior_weight ** 2, expr_prior_weight ** 2, jaw_prior_weight ** 2]
    l2_w2 = jnp.concatenate([jnp.full((d,), 1.0, f32) * w2
                             for d, w2 in zip(dims, w2s)])
    l2_w2 = jnp.pad(l2_w2, (0, _LANES - sum(dims)))[None, :]  # (1, 128)

    # --- angle (bending) prior constants ---------------------------------------
    pose63 = _pad_lanes(full_pose[:, 3:66].astype(f32))       # (B, 128)
    sign2_np = np.zeros((_LANES,), np.float32)
    sign2_np[_ANGLE_IDXS] = 2.0 * _ANGLE_SIGNS                # exp(2*x*s) == exp(x*s)**2
    mask_np = np.zeros((_LANES,), np.float32)
    mask_np[_ANGLE_IDXS] = 1.0
    sign2 = jnp.asarray(sign2_np)[None, :]
    ang_w = jnp.asarray(mask_np)[None, :] * bending_prior_weight

    bcast = lambda v: jnp.broadcast_to(jnp.asarray(v, f32), (B, _LANES))
    slab = jnp.stack([gt_x, gt_y, pj_x, pj_y, conf, jw,
                      prior_row, pose63,
                      bcast(l2_w2), bcast(sign2), bcast(ang_w)],
                     axis=0)                                  # (11, B, 128)

    scalars = jnp.array([data_weight * data_weight, rho * rho], f32)

    out = pl.pallas_call(
        _smplify_loss_kernel,
        out_shape=jax.ShapeDtypeStruct((1, 1), jnp.float32),
        in_specs=[pl.BlockSpec(memory_space=pltpu.MemorySpace.SMEM),
                  pl.BlockSpec(memory_space=pltpu.MemorySpace.VMEM)],
        out_specs=pl.BlockSpec(memory_space=pltpu.MemorySpace.SMEM),
        compiler_params=pltpu.CompilerParams(vmem_limit_bytes=2 * 1024 * 1024),
    )(scalars, slab)
    return out[0, 0]


# ----------------------------------------------------------------------------
# Pure-JAX reference (mirrors the PyTorch forward semantics; differentiable).
# ----------------------------------------------------------------------------
def smplify_loss_ref(gt_joints, projected_joints, joints_conf, joint_weights,
                     body_pose, betas, full_pose,
                     left_hand_pose, right_hand_pose, expression, jaw_pose,
                     *, rho, data_weight, body_pose_weight, shape_weight,
                     bending_prior_weight, hand_prior_weight,
                     expr_prior_weight, jaw_prior_weight):
    weights = (joint_weights * joints_conf)[..., None]
    res = gt_joints - projected_joints
    sq = res ** 2
    joint_diff = rho ** 2 * (sq / (sq + rho ** 2))
    joint_loss = jnp.sum(weights ** 2 * joint_diff) * data_weight ** 2
    pprior_loss = jnp.sum(body_pose ** 2) * body_pose_weight ** 2
    shape_loss = jnp.sum(betas ** 2) * shape_weight ** 2
    bpose = full_pose[:, 3:66]
    angle = jnp.exp(bpose[:, _ANGLE_IDXS] * _ANGLE_SIGNS) ** 2
    angle_loss = jnp.sum(angle) * bending_prior_weight
    lh = jnp.sum(left_hand_pose ** 2) * hand_prior_weight ** 2
    rh = jnp.sum(right_hand_pose ** 2) * hand_prior_weight ** 2
    ex = jnp.sum(expression ** 2) * expr_prior_weight ** 2
    jw = jnp.sum((jaw_pose * jaw_prior_weight) ** 2)
    return (joint_loss + pprior_loss + shape_loss + angle_loss +
            lh + rh + ex + jw)


if __name__ == "__main__":
    key = jax.random.PRNGKey(0)
    ks = jax.random.split(key, 11)

    B, J = 2, 24
    gt_joints = jax.random.normal(ks[0], (B, J, 2), jnp.float32) * 50.0
    projected_joints = gt_joints + jax.random.normal(ks[1], (B, J, 2), jnp.float32) * 5.0
    joints_conf = jax.random.uniform(ks[2], (B, J), jnp.float32)
    joint_weights = jnp.ones((B, J), jnp.float32)
    body_pose = jax.random.normal(ks[3], (B, 63), jnp.float32) * 0.2
    betas = jax.random.normal(ks[4], (B, 10), jnp.float32) * 0.5
    full_pose = jax.random.normal(ks[5], (B, 165), jnp.float32) * 0.2
    left_hand_pose = jax.random.normal(ks[6], (B, 12), jnp.float32) * 0.3
    right_hand_pose = jax.random.normal(ks[7], (B, 12), jnp.float32) * 0.3
    expression = jax.random.normal(ks[8], (B, 10), jnp.float32) * 0.4
    jaw_pose = jax.random.normal(ks[9], (B, 3), jnp.float32) * 0.1

    weight_kwargs = dict(rho=100.0, data_weight=1.0, body_pose_weight=0.5,
                         shape_weight=0.5, bending_prior_weight=0.3,
                         hand_prior_weight=0.2, expr_prior_weight=0.2,
                         jaw_prior_weight=0.1)

    loss = smplify_loss(gt_joints, projected_joints, joints_conf, joint_weights,
                        body_pose, betas, full_pose,
                        left_hand_pose, right_hand_pose, expression, jaw_pose,
                        **weight_kwargs)
    loss = jax.block_until_ready(loss)

    ref = smplify_loss_ref(gt_joints, projected_joints, joints_conf,
                           joint_weights, body_pose, betas, full_pose,
                           left_hand_pose, right_hand_pose, expression,
                           jaw_pose, **weight_kwargs)
    ref = jax.block_until_ready(ref)

    np.testing.assert_allclose(np.asarray(loss), np.asarray(ref),
                               rtol=1e-4, atol=1e-4)
    print("KERNEL_OK")
</pallas_src>

<mosaic_0001>
module attributes {stable_mosaic.version = 11 : i64} {
  func.func @_smplify_loss_kernel(%arg0: memref<2xf32, #tpu.memory_space<smem>>, %arg1: memref<11x2x128xf32, #tpu.memory_space<vmem>>, %arg2: memref<1x1xf32, #tpu.memory_space<smem>>) attributes {dimension_semantics = [], scalar_prefetch = 0 : i64, scratch_operands = 0 : i64, tpu.core_type = #tpu.core_type<tc>} {
    %c0 = arith.constant 0 : index
    %0 = memref.load %arg0[%c0] : memref<2xf32, #tpu.memory_space<smem>>
    %c1 = arith.constant 1 : index
    %1 = memref.load %arg0[%c1] : memref<2xf32, #tpu.memory_space<smem>>
    %c0_0 = arith.constant 0 : index
    %c0_1 = arith.constant 0 : index
    %c0_2 = arith.constant 0 : index
    %2 = vector.load %arg1[%c0_0, %c0_1, %c0_2] : memref<11x2x128xf32, #tpu.memory_space<vmem>>, vector<1x2x128xf32>
    %3 = vector.shape_cast %2 : vector<1x2x128xf32> to vector<2x128xf32>
    %c2 = arith.constant 2 : index
    %c0_3 = arith.constant 0 : index
    %c0_4 = arith.constant 0 : index
    %4 = vector.load %arg1[%c2, %c0_3, %c0_4] : memref<11x2x128xf32, #tpu.memory_space<vmem>>, vector<1x2x128xf32>
    %5 = vector.shape_cast %4 : vector<1x2x128xf32> to vector<2x128xf32>
    %6 = arith.subf %3, %5 : vector<2x128xf32>
    %c1_5 = arith.constant 1 : index
    %c0_6 = arith.constant 0 : index
    %c0_7 = arith.constant 0 : index
    %7 = vector.load %arg1[%c1_5, %c0_6, %c0_7] : memref<11x2x128xf32, #tpu.memory_space<vmem>>, vector<1x2x128xf32>
    %8 = vector.shape_cast %7 : vector<1x2x128xf32> to vector<2x128xf32>
    %c3 = arith.constant 3 : index
    %c0_8 = arith.constant 0 : index
    %c0_9 = arith.constant 0 : index
    %9 = vector.load %arg1[%c3, %c0_8, %c0_9] : memref<11x2x128xf32, #tpu.memory_space<vmem>>, vector<1x2x128xf32>
    %10 = vector.shape_cast %9 : vector<1x2x128xf32> to vector<2x128xf32>
    %11 = arith.subf %8, %10 : vector<2x128xf32>
    %12 = arith.mulf %6, %6 : vector<2x128xf32>
    %13 = arith.mulf %11, %11 : vector<2x128xf32>
    %14 = vector.broadcast %1 : f32 to vector<2x128xf32>
    %15 = arith.addf %12, %14 : vector<2x128xf32>
    %16 = arith.divf %12, %15 : vector<2x128xf32>
    %17 = vector.broadcast %1 : f32 to vector<2x128xf32>
    %18 = arith.mulf %17, %16 : vector<2x128xf32>
    %19 = vector.broadcast %1 : f32 to vector<2x128xf32>
    %20 = arith.addf %13, %19 : vector<2x128xf32>
    %21 = arith.divf %13, %20 : vector<2x128xf32>
    %22 = vector.broadcast %1 : f32 to vector<2x128xf32>
    %23 = arith.mulf %22, %21 : vector<2x128xf32>
    %24 = arith.addf %18, %23 : vector<2x128xf32>
    %c4 = arith.constant 4 : index
    %c0_10 = arith.constant 0 : index
    %c0_11 = arith.constant 0 : index
    %25 = vector.load %arg1[%c4, %c0_10, %c0_11] : memref<11x2x128xf32, #tpu.memory_space<vmem>>, vector<1x2x128xf32>
    %26 = vector.shape_cast %25 : vector<1x2x128xf32> to vector<2x128xf32>
    %c5 = arith.constant 5 : index
    %c0_12 = arith.constant 0 : index
    %c0_13 = arith.constant 0 : index
    %27 = vector.load %arg1[%c5, %c0_12, %c0_13] : memref<11x2x128xf32, #tpu.memory_space<vmem>>, vector<1x2x128xf32>
    %28 = vector.shape_cast %27 : vector<1x2x128xf32> to vector<2x128xf32>
    %29 = arith.mulf %26, %28 : vector<2x128xf32>
    %30 = arith.mulf %29, %29 : vector<2x128xf32>
    %31 = arith.mulf %30, %24 : vector<2x128xf32>
    %32 = vector.broadcast %0 : f32 to vector<2x128xf32>
    %33 = arith.mulf %31, %32 : vector<2x128xf32>
    %c6 = arith.constant 6 : index
    %c0_14 = arith.constant 0 : index
    %c0_15 = arith.constant 0 : index
    %34 = vector.load %arg1[%c6, %c0_14, %c0_15] : memref<11x2x128xf32, #tpu.memory_space<vmem>>, vector<1x2x128xf32>
    %35 = vector.shape_cast %34 : vector<1x2x128xf32> to vector<2x128xf32>
    %36 = arith.mulf %35, %35 : vector<2x128xf32>
    %c8 = arith.constant 8 : index
    %c0_16 = arith.constant 0 : index
    %c0_17 = arith.constant 0 : index
    %37 = vector.load %arg1[%c8, %c0_16, %c0_17] : memref<11x2x128xf32, #tpu.memory_space<vmem>>, vector<1x2x128xf32>
    %38 = vector.shape_cast %37 : vector<1x2x128xf32> to vector<2x128xf32>
    %39 = arith.mulf %36, %38 : vector<2x128xf32>
    %c7 = arith.constant 7 : index
    %c0_18 = arith.constant 0 : index
    %c0_19 = arith.constant 0 : index
    %40 = vector.load %arg1[%c7, %c0_18, %c0_19] : memref<11x2x128xf32, #tpu.memory_space<vmem>>, vector<1x2x128xf32>
    %41 = vector.shape_cast %40 : vector<1x2x128xf32> to vector<2x128xf32>
    %c9 = arith.constant 9 : index
    %c0_20 = arith.constant 0 : index
    %c0_21 = arith.constant 0 : index
    %42 = vector.load %arg1[%c9, %c0_20, %c0_21] : memref<11x2x128xf32, #tpu.memory_space<vmem>>, vector<1x2x128xf32>
    %43 = vector.shape_cast %42 : vector<1x2x128xf32> to vector<2x128xf32>
    %44 = arith.mulf %41, %43 : vector<2x128xf32>
    %45 = math.exp %44 : vector<2x128xf32>
    %c10 = arith.constant 10 : index
    %c0_22 = arith.constant 0 : index
    %c0_23 = arith.constant 0 : index
    %46 = vector.load %arg1[%c10, %c0_22, %c0_23] : memref<11x2x128xf32, #tpu.memory_space<vmem>>, vector<1x2x128xf32>
    %47 = vector.shape_cast %46 : vector<1x2x128xf32> to vector<2x128xf32>
    %48 = arith.mulf %45, %47 : vector<2x128xf32>
    %49 = arith.addf %33, %39 : vector<2x128xf32>
    %50 = arith.addf %49, %48 : vector<2x128xf32>
    %51 = vector.shape_cast %50 : vector<2x128xf32> to vector<1x2x128xf32>
    %cst = arith.constant dense<0.000000e+00> : vector<1xf32>
    %52 = vector.multi_reduction <add>, %51, %cst [1, 2] : vector<1x2x128xf32> to vector<1xf32>
    %53 = vector.shape_cast %52 : vector<1xf32> to vector<1x1x1xf32>
    %54 = vector.extract %53[0, 0, 0] : f32 from vector<1x1x1xf32>
    %c0_24 = arith.constant 0 : index
    %c0_25 = arith.constant 0 : index
    %55 = memref.load %arg2[%c0_24, %c0_25] : memref<1x1xf32, #tpu.memory_space<smem>>
    memref.store %54, %arg2[%c0_24, %c0_25] : memref<1x1xf32, #tpu.memory_space<smem>>
    return
  }
}

</mosaic_0001>

<llo_original>
// kernel: tpu_custom_call.1
$region0: #{tpu_custom_call.1}
  #allocation0 [shape = 'u32[]', space=smem, size = 0x4, offset = 0x4, fixed_abs, tag = 'smem constant byte address 0x4 - core index']
  #allocation1 [shape = 'u32[144,128]{1,0:T(1,128)}', space=vmem, size = 0x12000, scoped, tag = 'internal scratch']
  %s0 = inlined_call_operand.hbm [shape: f32[2], index: 0, kind: input, shape index: {}]
  %s1 = inlined_call_operand.hbm [shape: f32[11,2,128], index: 1, kind: input, shape index: {}]
  %s2 = inlined_call_operand.hbm [shape: f32[1,1], index: 2, kind: output, shape index: {}]
  %s3 = sld [smem:[#allocation0]]
  $region26: #{tpu_custom_call.1} parent=0
    _
  %s5 = ssub.s32 1, %s3
  %s6 = scalar_select 0, %s5, %s3
  $region1: #{tpu_custom_call.1} parent=0
    #allocation2 [shape = 'u8[512]{0}', space=smem, size = 0x200, scoped, tag = 'input window, operand 0, single buffered']
    #allocation3 [shape = 's32[1]{0}', space=sflag, size = 0x4, scoped, tag = 'scoped memory for tpu_custom_call.1']
    #allocation4 [shape = 's32[1]{0}', space=sflag, size = 0x4, scoped, tag = 'scoped memory for tpu_custom_call.1']
    #allocation5 [shape = 's32[1]{0}', space=sflag, size = 0x4, scoped, tag = 'scoped memory for tpu_custom_call.1']
    #allocation6 [shape = 'u8[11264]{0}', space=vmem, size = 0x2c00, scoped, tag = 'input window, operand 1, single buffered']
    #allocation7 [shape = 'u8[512]{0}', space=smem, size = 0x200, scoped, tag = 'output window, operand 0, single buffered']
    %7 = vsyncpa [#allocation4], 0
    %8 = vsyncpa [#allocation3], 0
    %9 = vsyncpa [#allocation5], 0
    // Predicated region
    $region2: #{tpu_custom_call.1} parent=1 // pred_check
      _
    $region3: #{tpu_custom_call.1} parent=1 // pred_check_branch
      %11 = sbr.rel (0) target = $region5
    $region4: #{tpu_custom_call.1} parent=1 // pred_region
      %s13 = ssub.s32 16, 16
      %14 = vsyncadd [#allocation4], %s13
      %17 = dma.hbm_to_smem %s0, 16, [#allocation2], [#allocation4]
    $region5: #{tpu_custom_call.1} parent=1 // pred_fallthru
      _
    // Predicated region
    $region6: #{tpu_custom_call.1} parent=1 // pred_check
      _
    $region7: #{tpu_custom_call.1} parent=1 // pred_check_branch
      %19 = sbr.rel (0) target = $region9
    $region8: #{tpu_custom_call.1} parent=1 // pred_region
      %s21 = ssub.s32 352, 352
      %22 = vsyncadd [#allocation3], %s21
      %s23 = sshll.u32 [#allocation6], 4
      %s24 = int_to_ptr.vmem [resolvable:$true] %s23
      %29 = dma.hbm_to_vmem [thread:$0]  %s1, 352, %s24, [#allocation3], 32, 32, 2
    $region9: #{tpu_custom_call.1} parent=1 // pred_fallthru
      _
    // Predicated region
    $region10: #{tpu_custom_call.1} parent=1 // pred_check
      _
    $region11: #{tpu_custom_call.1} parent=1 // pred_check_branch
      %31 = sbr.rel (0) target = $region13
    $region12: #{tpu_custom_call.1} parent=1 // pred_region
      %32 = dma.done [#allocation4], 16
    $region13: #{tpu_custom_call.1} parent=1 // pred_fallthru
      _
    // Predicated region
    $region14: #{tpu_custom_call.1} parent=1 // pred_check
      _
    $region15: #{tpu_custom_call.1} parent=1 // pred_check_branch
      %34 = sbr.rel (0) target = $region17
    $region16: #{tpu_custom_call.1} parent=1 // pred_region
      %35 = dma.done [#allocation3], 352
    $region17: #{tpu_custom_call.1} parent=1 // pred_fallthru
      _
    %36 = sfence
    %s37 = sld [smem:[#allocation2]]
    %s38 = sld [smem:[#allocation2 + $0x1]]
    %v39 = vld [vmem:[#allocation6] sm:$0x3]
    %s40 = scalar_lea.vmem [#allocation6], 4
    %v41 = vld [vmem:[%s40] sm:$0x3]
    %v42 = vsub.f32 %v39, %v41
    %s43 = scalar_lea.vmem [#allocation6], 2
    %v44 = vld [vmem:[%s43] sm:$0x3]
    %s45 = scalar_lea.vmem [#allocation6], 6
    %v46 = vld [vmem:[%s45] sm:$0x3]
    %v47 = vsub.f32 %v44, %v46
    %v48 = vmul.f32 %v42, %v42
    %v49 = vmul.f32 %v47, %v47
    %v50 = vstv %s38
    %v51 = vadd.f32 %v48, %v50
    %v52 = vrcp.pop %v51
    %v53 = vmul.f32 %v48, %v52
    %v54 = vmul.f32 %v50, %v53
    %v55 = vadd.f32 %v49, %v50
    %v56 = vrcp.pop %v55
    %v57 = vmul.f32 %v49, %v56
    %v58 = vmul.f32 %v50, %v57
    %v59 = vadd.f32 %v54, %v58
    %s60 = scalar_lea.vmem [#allocation6], 8
    %v61 = vld [vmem:[%s60] sm:$0x3]
    %s62 = scalar_lea.vmem [#allocation6], 10
    %v63 = vld [vmem:[%s62] sm:$0x3]
    %v64 = vmul.f32 %v61, %v63
    %v65 = vmul.f32 %v64, %v64
    %v66 = vmul.f32 %v65, %v59
    %v67 = vstv %s37
    %v68 = vmul.f32 %v66, %v67
    %s69 = scalar_lea.vmem [#allocation6], 12
    %v70 = vld [vmem:[%s69] sm:$0x3]
    %v71 = vmul.f32 %v70, %v70
    %s72 = scalar_lea.vmem [#allocation6], 16
    %v73 = vld [vmem:[%s72] sm:$0x3]
    %v74 = vmul.f32 %v71, %v73
    %s75 = scalar_lea.vmem [#allocation6], 14
    %v76 = vld [vmem:[%s75] sm:$0x3]
    %s77 = scalar_lea.vmem [#allocation6], 18
    %v78 = vld [vmem:[%s77] sm:$0x3]
    %v79 = vmul.f32 %v76, %v78
    %v80 = vmul.f32 %v79, 1.442695
    %v81 = vpow.pop %v80
    %s82 = scalar_lea.vmem [#allocation6], 20
    %v83 = vld [vmem:[%s82] sm:$0x3]
    %v84 = vmul.f32 %v81, %v83
    %v85 = vadd.f32 %v68, %v74
    %v86 = vadd.f32 %v85, %v84
    %vm87 = vcmask 1041408
    %v88 = vsel %vm87, %v86, 0.0
    %89 = vadd.xlane.f32.xlu0 %v88
    %v90 = vpop.xlane.xlu0 %89
    %v91 = vrot.slane %v90, 4
    %v92 = vadd.f32 %v90, %v91
    %v93 = vrot.slane %v92, 2
    %v94 = vadd.f32 %v92, %v93
    %v95 = vrot.slane %v94, 1
    %v96 = vadd.f32 %v94, %v95
    %s97 = vtos %v96
    %s98 = scalar_lea.smem [#allocation7], 0
    %99 = sst [smem:[%s98]] %s97
    // Predicated region
    $region18: #{tpu_custom_call.1} parent=1 // pred_check
      _
    $region19: #{tpu_custom_call.1} parent=1 // pred_check_branch
      %101 = sbr.rel (0) target = $region21
    $region20: #{tpu_custom_call.1} parent=1 // pred_region
      %s103 = ssub.s32 16, 16
      %104 = vsyncadd [#allocation5], %s103
      %107 = dma.smem_to_hbm [#allocation7], 16, %s2, [#allocation5]
    $region21: #{tpu_custom_call.1} parent=1 // pred_fallthru
      _
    // Predicated region
    $region22: #{tpu_custom_call.1} parent=1 // pred_check
      _
    $region23: #{tpu_custom_call.1} parent=1 // pred_check_branch
      %109 = sbr.rel (0) target = $region25
    $region24: #{tpu_custom_call.1} parent=1 // pred_region
      %110 = dma.done [#allocation5], 16
    $region25: #{tpu_custom_call.1} parent=1 // pred_fallthru
      _
    %111 = sfence
    %112 = vsyncpa [#allocation3], 1
    %113 = vsyncpa [#allocation4], 1
    %114 = vsyncpa [#allocation5], 1

</llo_original>
